<compile_context>
chip_gen: v5e
topology: v5e:2x2
jax: 0.10.0
libtpu: 0.0.40
codegen_flags: <defaults>
</compile_context>

<pallas_src>
import functools

import jax
import jax.numpy as jnp
from jax.experimental import pallas as pl
from jax.experimental.pallas import tpu as pltpu

_LANE = 128


def _cdiv(a, b):
    return -(-a // b)


def _sublane_multiple(*dtypes):
    """Minimum sublane tile multiple for the narrowest participating dtype."""
    m = 8
    for dt in dtypes:
        m = max(m, 8 * (4 // max(1, jnp.dtype(dt).itemsize)))
    return m


def _mse_partial_kernel(pred_ref, gt_ref, sum_ref, cnt_ref, *, tile_rows, rows_total):
    """Accumulate lane-shaped (1, 128) masked sq-err sums & counts per image."""
    t = pl.program_id(1)  # reduction ("arbitrary") axis over row tiles

    @pl.when(t == 0)
    def _init():
        sum_ref[...] = jnp.zeros_like(sum_ref)
        cnt_ref[...] = jnp.zeros_like(cnt_ref)

    p = pred_ref[...].astype(jnp.float32)   # (tile_rows, 128)
    g = gt_ref[...].astype(jnp.float32)

    mask = g > 0.0
    if rows_total % tile_rows != 0:
        # Ragged last tile: sublane rows past the array end hold unspecified
        # data, so mask them out (this branch is compiled in only when needed).
        row = jax.lax.broadcasted_iota(jnp.int32, p.shape, 0)
        mask = jnp.logical_and(mask, row < (rows_total - t * tile_rows))

    err = jnp.where(mask, p - g, 0.0)
    # Lane-shaped partials (sublane reduce only); the cross-lane reduce and the
    # divide are deferred to the wrapper on tiny (B, 1, 128) partials.
    sum_ref[...] += jnp.sum(err * err, axis=0, keepdims=True)
    cnt_ref[...] += jnp.sum(mask.astype(jnp.float32), axis=0, keepdims=True)


def mse_loss_pallas(prediction, gt, *, tile_rows=2048):
    """Masked MSE loss: mean((prediction[:, 0:1] - gt)[gt > 0] ** 2)."""
    N, C, H, W = prediction.shape
    assert gt.shape == (N, 1, H, W), "gt must have shape (N, 1, H, W)"
    HW = H * W

    if HW % _LANE == 0:
        # Fast path: copy-free lane-dense views; channel-0 selection is done by
        # the prediction BlockSpec index_map so only channel 0 leaves HBM.
        R = HW // _LANE
        p4 = prediction.reshape(N, C, R, _LANE)
        g3 = gt.reshape(N, R, _LANE)
        B = N
    else:
        # TODO(synk): lane-misaligned spatial planes still pay one extra HBM
        # pass (slice + pad); could be removed with an Element-indexed gather.
        flat_p = prediction[:, 0].reshape(-1)
        flat_g = gt.reshape(-1)
        total = flat_g.size
        R = _cdiv(total, _LANE)
        pad = R * _LANE - total
        # gt padded with 0.0 -> mask False, so padding contributes nothing.
        p4 = jnp.pad(flat_p, (0, pad)).reshape(1, 1, R, _LANE)
        g3 = jnp.pad(flat_g, (0, pad)).reshape(1, R, _LANE)
        B = 1

    # Tile sizing: full dim for small planes (always legal), else a
    # sublane-aligned tile rounded to the dtype's packing multiple.
    sub = _sublane_multiple(prediction.dtype, gt.dtype)
    if R <= max(tile_rows, sub):
        tile_r = R
    else:
        tile_r = max(sub, (min(tile_rows, R) // sub) * sub)
    num_tiles = _cdiv(R, tile_r)

    p_item = jnp.dtype(prediction.dtype).itemsize
    g_item = jnp.dtype(gt.dtype).itemsize

    kernel = functools.partial(_mse_partial_kernel, tile_rows=tile_r, rows_total=R)

    elems = B * R * _LANE  # only channel 0 of prediction is ever read
    cost = pl.CostEstimate(
        flops=5 * elems,
        transcendentals=0,
        bytes_accessed=elems * (p_item + g_item) + 2 * B * _LANE * 4,
    )

    # Double-buffered inputs + tiny resident outputs, with headroom.
    in_bytes = 2 * tile_r * _LANE * (p_item + g_item)
    vmem_limit = int(min(100 << 20, max(2 * in_bytes + (4 << 20), 16 << 20)))

    sums, cnts = pl.pallas_call(
        kernel,
        out_shape=(
            jax.ShapeDtypeStruct((B, 1, _LANE), jnp.float32),
            jax.ShapeDtypeStruct((B, 1, _LANE), jnp.float32),
        ),
        grid=(B, num_tiles),
        in_specs=[
            # Channel-0 select happens here: block index (b, 0, t, 0).
            pl.BlockSpec((None, None, tile_r, _LANE), lambda b, t: (b, 0, t, 0)),
            pl.BlockSpec((None, tile_r, _LANE), lambda b, t: (b, t, 0)),
        ],
        out_specs=(
            pl.BlockSpec((None, 1, _LANE), lambda b, t: (b, 0, 0)),
            pl.BlockSpec((None, 1, _LANE), lambda b, t: (b, 0, 0)),
        ),
        compiler_params=pltpu.CompilerParams(
            dimension_semantics=("parallel", "arbitrary"),
            vmem_limit_bytes=vmem_limit,
        ),
        cost_estimate=cost,
    )(p4, g3)

    # Final tiny cross-lane reduce + divide in XLA.
    # NOTE: count == 0 (no gt > 0 pixels) yields NaN, intentionally matching
    # torch.mean over an empty selection.
    return jnp.sum(sums) / jnp.sum(cnts)


def mse_loss_ref(prediction, gt):
    """Pure-JAX reference (mirrors the PyTorch module)."""
    err = prediction[:, 0:1] - gt
    mask = gt > 0
    sq = jnp.where(mask, err * err, 0.0)
    return jnp.sum(sq) / jnp.sum(mask.astype(jnp.float32))


if __name__ == "__main__":
    key = jax.random.PRNGKey(0)
    kp, kg = jax.random.split(key)

    N, C, H, W = 2, 4, 16, 16
    prediction = jax.random.normal(kp, (N, C, H, W), dtype=jnp.float32)
    # gt with a mix of positive (valid) and non-positive (invalid) pixels.
    gt = jax.random.normal(kg, (N, 1, H, W), dtype=jnp.float32)

    loss = jax.block_until_ready(mse_loss_pallas(prediction, gt))
    ref = jax.block_until_ready(mse_loss_ref(prediction, gt))

    assert jnp.allclose(loss, ref, rtol=1e-5, atol=1e-6), (loss, ref)
    print("KERNEL_OK")
</pallas_src>

<mosaic_0001>
module attributes {stable_mosaic.version = 11 : i64} {
  func.func @_mse_partial_kernel(%arg0: i32, %arg1: i32, %arg2: memref<1x1x2x128xf32, #tpu.memory_space<vmem>>, %arg3: memref<1x2x128xf32, #tpu.memory_space<vmem>>, %arg4: memref<1x1x128xf32, #tpu.memory_space<vmem>>, %arg5: memref<1x1x128xf32, #tpu.memory_space<vmem>>) attributes {dimension_semantics = [#tpu.dimension_semantics<parallel>, #tpu.dimension_semantics<arbitrary>], iteration_bounds = array<i64: 2, 1>, scalar_prefetch = 0 : i64, scratch_operands = 0 : i64, tpu.core_type = #tpu.core_type<tc>, window_params = [{transform_indices = @transform_0, window_bounds = array<i64: 1, 1, 2, 128>}, {transform_indices = @transform_1, window_bounds = array<i64: 1, 2, 128>}, {transform_indices = @transform_2, window_bounds = array<i64: 1, 1, 128>}, {transform_indices = @transform_3, window_bounds = array<i64: 1, 1, 128>}]} {
    %c0_i32 = arith.constant 0 : i32
    %0 = arith.cmpi eq, %arg1, %c0_i32 : i32
    %1 = arith.extui %0 : i1 to i32
    %c0_i32_0 = arith.constant 0 : i32
    %2 = arith.cmpi ne, %1, %c0_i32_0 : i32
    scf.if %2 {
      %cst_22 = arith.constant 0.000000e+00 : f32
      %31 = vector.broadcast %cst_22 : f32 to vector<1x128xf32>
      %c0_23 = arith.constant 0 : index
      %c0_24 = arith.constant 0 : index
      %c0_25 = arith.constant 0 : index
      %32 = vector.load %arg4[%c0_23, %c0_24, %c0_25] : memref<1x1x128xf32, #tpu.memory_space<vmem>>, vector<1x1x128xf32>
      %33 = vector.shape_cast %32 : vector<1x1x128xf32> to vector<1x128xf32>
      %34 = vector.shape_cast %31 : vector<1x128xf32> to vector<1x1x128xf32>
      tpu.vector_store %arg4[%c0_23, %c0_24, %c0_25], %34 {strides = array<i32>} : memref<1x1x128xf32, #tpu.memory_space<vmem>>, vector<1x1x128xf32>,
      %cst_26 = arith.constant 0.000000e+00 : f32
      %35 = vector.broadcast %cst_26 : f32 to vector<1x128xf32>
      %c0_27 = arith.constant 0 : index
      %c0_28 = arith.constant 0 : index
      %c0_29 = arith.constant 0 : index
      %36 = vector.load %arg5[%c0_27, %c0_28, %c0_29] : memref<1x1x128xf32, #tpu.memory_space<vmem>>, vector<1x1x128xf32>
      %37 = vector.shape_cast %36 : vector<1x1x128xf32> to vector<1x128xf32>
      %38 = vector.shape_cast %35 : vector<1x128xf32> to vector<1x1x128xf32>
      tpu.vector_store %arg5[%c0_27, %c0_28, %c0_29], %38 {strides = array<i32>} : memref<1x1x128xf32, #tpu.memory_space<vmem>>, vector<1x1x128xf32>,
    } else {
    }
    %c0 = arith.constant 0 : index
    %c0_1 = arith.constant 0 : index
    %c0_2 = arith.constant 0 : index
    %c0_3 = arith.constant 0 : index
    %3 = vector.load %arg2[%c0, %c0_1, %c0_2, %c0_3] : memref<1x1x2x128xf32, #tpu.memory_space<vmem>>, vector<1x1x2x128xf32>
    %4 = vector.shape_cast %3 : vector<1x1x2x128xf32> to vector<2x128xf32>
    %c0_4 = arith.constant 0 : index
    %c0_5 = arith.constant 0 : index
    %c0_6 = arith.constant 0 : index
    %5 = vector.load %arg3[%c0_4, %c0_5, %c0_6] : memref<1x2x128xf32, #tpu.memory_space<vmem>>, vector<1x2x128xf32>
    %6 = vector.shape_cast %5 : vector<1x2x128xf32> to vector<2x128xf32>
    %cst = arith.constant 0.000000e+00 : f32
    %7 = vector.broadcast %cst : f32 to vector<2x128xf32>
    %8 = arith.cmpf ogt, %6, %7 : vector<2x128xf32>
    %9 = arith.subf %4, %6 : vector<2x128xf32>
    %cst_7 = arith.constant 0.000000e+00 : f32
    %10 = vector.broadcast %cst_7 : f32 to vector<2x128xf32>
    %11 = arith.select %8, %9, %10 : vector<2x128xi1>, vector<2x128xf32>
    %c0_8 = arith.constant 0 : index
    %c0_9 = arith.constant 0 : index
    %c0_10 = arith.constant 0 : index
    %12 = vector.load %arg4[%c0_8, %c0_9, %c0_10] : memref<1x1x128xf32, #tpu.memory_space<vmem>>, vector<1x1x128xf32>
    %13 = vector.shape_cast %12 : vector<1x1x128xf32> to vector<1x128xf32>
    %14 = arith.mulf %11, %11 : vector<2x128xf32>
    %cst_11 = arith.constant dense<0.000000e+00> : vector<128xf32>
    %15 = vector.multi_reduction <add>, %14, %cst_11 [0] : vector<2x128xf32> to vector<128xf32>
    %16 = vector.shape_cast %15 : vector<128xf32> to vector<1x128xf32>
    %17 = arith.addf %13, %16 : vector<1x128xf32>
    %c0_12 = arith.constant 0 : index
    %c0_13 = arith.constant 0 : index
    %c0_14 = arith.constant 0 : index
    %18 = vector.load %arg4[%c0_12, %c0_13, %c0_14] : memref<1x1x128xf32, #tpu.memory_space<vmem>>, vector<1x1x128xf32>
    %19 = vector.shape_cast %18 : vector<1x1x128xf32> to vector<1x128xf32>
    %20 = vector.shape_cast %17 : vector<1x128xf32> to vector<1x1x128xf32>
    tpu.vector_store %arg4[%c0_12, %c0_13, %c0_14], %20 {strides = array<i32>} : memref<1x1x128xf32, #tpu.memory_space<vmem>>, vector<1x1x128xf32>,
    %c0_15 = arith.constant 0 : index
    %c0_16 = arith.constant 0 : index
    %c0_17 = arith.constant 0 : index
    %21 = vector.load %arg5[%c0_15, %c0_16, %c0_17] : memref<1x1x128xf32, #tpu.memory_space<vmem>>, vector<1x1x128xf32>
    %22 = vector.shape_cast %21 : vector<1x1x128xf32> to vector<1x128xf32>
    %23 = arith.extui %8 : vector<2x128xi1> to vector<2x128xi32>
    %24 = arith.sitofp %23 : vector<2x128xi32> to vector<2x128xf32>
    %cst_18 = arith.constant dense<0.000000e+00> : vector<128xf32>
    %25 = vector.multi_reduction <add>, %24, %cst_18 [0] : vector<2x128xf32> to vector<128xf32>
    %26 = vector.shape_cast %25 : vector<128xf32> to vector<1x128xf32>
    %27 = arith.addf %22, %26 : vector<1x128xf32>
    %c0_19 = arith.constant 0 : index
    %c0_20 = arith.constant 0 : index
    %c0_21 = arith.constant 0 : index
    %28 = vector.load %arg5[%c0_19, %c0_20, %c0_21] : memref<1x1x128xf32, #tpu.memory_space<vmem>>, vector<1x1x128xf32>
    %29 = vector.shape_cast %28 : vector<1x1x128xf32> to vector<1x128xf32>
    %30 = vector.shape_cast %27 : vector<1x128xf32> to vector<1x1x128xf32>
    tpu.vector_store %arg5[%c0_19, %c0_20, %c0_21], %30 {strides = array<i32>} : memref<1x1x128xf32, #tpu.memory_space<vmem>>, vector<1x1x128xf32>,
    return
  }
  func.func @transform_0(%arg0: i32, %arg1: i32) -> (i32, i32, i32, i32) {
    %c0_i32 = arith.constant 0 : i32
    %c0_i32_0 = arith.constant 0 : i32
    %c0_i32_1 = arith.constant 0 : i32
    return %arg0, %c0_i32, %arg1, %c0_i32_0 : i32, i32, i32, i32
  }
  func.func @transform_1(%arg0: i32, %arg1: i32) -> (i32, i32, i32) {
    %c0_i32 = arith.constant 0 : i32
    %c0_i32_0 = arith.constant 0 : i32
    return %arg0, %arg1, %c0_i32 : i32, i32, i32
  }
  func.func @transform_2(%arg0: i32, %arg1: i32) -> (i32, i32, i32) {
    %c0_i32 = arith.constant 0 : i32
    %c0_i32_0 = arith.constant 0 : i32
    %c0_i32_1 = arith.constant 0 : i32
    return %arg0, %c0_i32, %c0_i32_0 : i32, i32, i32
  }
  func.func @transform_3(%arg0: i32, %arg1: i32) -> (i32, i32, i32) {
    %c0_i32 = arith.constant 0 : i32
    %c0_i32_0 = arith.constant 0 : i32
    %c0_i32_1 = arith.constant 0 : i32
    return %arg0, %c0_i32, %c0_i32_0 : i32, i32, i32
  }
}

</mosaic_0001>

<llo_original>
// kernel: tpu_custom_call.1
$region0: #{tpu_custom_call.1}
  #allocation0 [shape = 'u32[]', space=smem, size = 0x4, offset = 0x4, fixed_abs, tag = 'smem constant byte address 0x4 - core index']
  #allocation1 [shape = 'u32[72,128]{1,0:T(1,128)}', space=vmem, size = 0x9000, scoped, tag = 'internal scratch']
  %s0 = inlined_call_operand.hbm [shape: f32[2,4,2,128], index: 0, kind: input, shape index: {}]
  %s1 = inlined_call_operand.hbm [shape: f32[2,2,128], index: 1, kind: input, shape index: {}]
  %s2 = inlined_call_operand.hbm [shape: f32[2,1,128], index: 2, kind: output, shape index: {0}]
  %s3 = inlined_call_operand.hbm [shape: f32[2,1,128], index: 3, kind: output, shape index: {1}]
  %4 = xla_tuple %s2, %s3
  %s5 = sld [smem:[#allocation0]]
  $region61: #{tpu_custom_call.1} parent=0
    _
  %s7 = ssub.s32 1, %s5
  %s8 = scalar_select 0, %s7, %s5
  $region1: #{tpu_custom_call.1} parent=0
    #allocation2 [shape = 'u8[2048]{0}', space=vmem, size = 0x800, scoped, tag = 'input window, operand 0']
    #allocation3 [shape = 's32[2]{0}', space=sflag, size = 0x8, scoped, tag = 'scoped memory for tpu_custom_call.1']
    #allocation4 [shape = 's32[2]{0}', space=sflag, size = 0x8, scoped, tag = 'scoped memory for tpu_custom_call.1']
    #allocation5 [shape = 'u8[2048]{0}', space=vmem, size = 0x800, scoped, tag = 'input window, operand 1']
    #allocation6 [shape = 's32[2]{0}', space=sflag, size = 0x8, scoped, tag = 'scoped memory for tpu_custom_call.1']
    #allocation7 [shape = 'u8[1024]{0}', space=vmem, size = 0x400, scoped, tag = 'output window, operand 0']
    #allocation8 [shape = 'u8[1024]{0}', space=vmem, size = 0x400, scoped, tag = 'output window, operand 1']
    #allocation9 [shape = 's32[2]{0}', space=sflag, size = 0x8, scoped, tag = 'scoped memory for tpu_custom_call.1']
    %9 = vsyncpa [#allocation3], 0
    %s10 = scalar_lea.sflag [#allocation3], 1
    %11 = vsyncpa %s10, 0
    %12 = vsyncpa [#allocation6], 0
    %s13 = scalar_lea.sflag [#allocation6], 1
    %14 = vsyncpa %s13, 0
    %15 = vsyncpa [#allocation4], 0
    %s16 = scalar_lea.sflag [#allocation4], 1
    %17 = vsyncpa %s16, 0
    %18 = vsyncpa [#allocation9], 0
    %s19 = scalar_lea.sflag [#allocation9], 1
    %20 = vsyncpa %s19, 0
    loop: start=0, step=1, limit=4
    $region2: #{tpu_custom_call.1} parent=1 // loop_pre_header
      _
    $region3: #{tpu_custom_call.1} parent=1 // loop_header
      %s22 = sphi 0, %s26
      %p23 = scmp.ge.s32.totalorder %s22, 4
      %s29 = sphi 0, %s41
      %s30 = sphi 0, %s37
      %s31 = sphi 0, %s29
      %s32 = sphi 0, %s30
      %s33 = sphi 0, %s31
      %s34 = sphi 0, %s32
      %s46 = sphi 0, %s48
      %s49 = sphi 0, %s46
      %s50 = sphi 0, %s49
      %s66 = sphi 0, %s50
      %s74 = sphi 0, %s76
      %s77 = sphi 0, %s74
      %s78 = sphi 0, %s77
      %s94 = sphi 0, %s78
      %s100 = sphi 0, %s102
      %s103 = sphi 0, %s100
      %s104 = sphi 0, %s103
      %s120 = sphi 0, %s104
      %s126 = sphi 0, %s128
      %s129 = sphi 0, %s126
      %s130 = sphi 0, %s129
      %s146 = sphi 0, %s130
    $region4: #{tpu_custom_call.1} parent=1 // loop_header_branch
      %25 = sbr.rel (%p23) target = $region8
    $region5: #{tpu_custom_call.1} parent=1 // loop_body
      %s27 = ssub.s32 %s22, 1
      %s28 = ssub.s32 %s22, 2
      %s35 = sadd.s32 1, %s30
      %p36 = scmp.ge.s32.totalorder %s35, 1
      %s37 = scalar_select %p36, 0, %s35
      %s38 = sadd.s32 1, %s29
      %s39 = scalar_select %p36, %s38, %s29
      %p40 = scmp.ge.s32.totalorder %s39, 2
      %s41 = scalar_select %p40, 0, %s39
      %s42 = ssub.s32 %s29, %s41
      %s43 = ssub.s32 %s30, %s37
      %s44 = sor.u32 %s42, %s43
      %p45 = scmp.eq.s32.totalorder %s44, 0
      %s47 = sadd.s32 %s46, 1
      %s48 = scalar_select %p45, %s46, %s47
      %p51 = pneg %p45
      %p52 = scmp.eq.s32.totalorder %s22, 1
      %p53 = por %p51, %p52
      %p54 = scmp.ne.s32.totalorder %s46, %s49
      %p55 = scmp.eq.s32.totalorder %s22, 0
      %p56 = por %p54, %p55
      %p57 = scmp.ne.s32.totalorder %s46, %s49
      %p58 = scmp.eq.s32.totalorder %s27, 1
      %p59 = por %p57, %p58
      %p60 = scmp.ne.s32.totalorder %s49, %s50
      %p61 = scmp.eq.s32.totalorder %s27, 0
      %p62 = por %p60, %p61
      %p63 = scmp.ne.s32.totalorder %s49, %s50
      %p64 = scmp.eq.s32.totalorder %s28, 1
      %p65 = por %p63, %p64
      %p67 = scmp.ne.s32.totalorder %s50, %s66
      %p68 = scmp.eq.s32.totalorder %s28, 0
      %p69 = por %p67, %p68
      %s70 = ssub.s32 %s29, %s41
      %s71 = ssub.s32 %s30, %s37
      %s72 = sor.u32 %s70, %s71
      %p73 = scmp.eq.s32.totalorder %s72, 0
      %s75 = sadd.s32 %s74, 1
      %s76 = scalar_select %p73, %s74, %s75
      %p79 = pneg %p73
      %p80 = scmp.eq.s32.totalorder %s22, 1
      %p81 = por %p79, %p80
      %p82 = scmp.ne.s32.totalorder %s74, %s77
      %p83 = scmp.eq.s32.totalorder %s22, 0
      %p84 = por %p82, %p83
      %p85 = scmp.ne.s32.totalorder %s74, %s77
      %p86 = scmp.eq.s32.totalorder %s27, 1
      %p87 = por %p85, %p86
      %p88 = scmp.ne.s32.totalorder %s77, %s78
      %p89 = scmp.eq.s32.totalorder %s27, 0
      %p90 = por %p88, %p89
      %p91 = scmp.ne.s32.totalorder %s77, %s78
      %p92 = scmp.eq.s32.totalorder %s28, 1
      %p93 = por %p91, %p92
      %p95 = scmp.ne.s32.totalorder %s78, %s94
      %p96 = scmp.eq.s32.totalorder %s28, 0
      %p97 = por %p95, %p96
      %s98 = ssub.s32 %s29, %s41
      %p99 = scmp.eq.s32.totalorder %s98, 0
      %s101 = sadd.s32 %s100, 1
      %s102 = scalar_select %p99, %s100, %s101
      %p105 = pneg %p99
      %p106 = scmp.eq.s32.totalorder %s22, 1
      %p107 = por %p105, %p106
      %p108 = scmp.ne.s32.totalorder %s100, %s103
      %p109 = scmp.eq.s32.totalorder %s22, 0
      %p110 = por %p108, %p109
      %p111 = scmp.ne.s32.totalorder %s100, %s103
      %p112 = scmp.eq.s32.totalorder %s27, 1
      %p113 = por %p111, %p112
      %p114 = scmp.ne.s32.totalorder %s103, %s104
      %p115 = scmp.eq.s32.totalorder %s27, 0
      %p116 = por %p114, %p115
      %p117 = scmp.ne.s32.totalorder %s103, %s104
      %p118 = scmp.eq.s32.totalorder %s28, 1
      %p119 = por %p117, %p118
      %p121 = scmp.ne.s32.totalorder %s104, %s120
      %p122 = scmp.eq.s32.totalorder %s28, 0
      %p123 = por %p121, %p122
      %s124 = ssub.s32 %s29, %s41
      %p125 = scmp.eq.s32.totalorder %s124, 0
      %s127 = sadd.s32 %s126, 1
      %s128 = scalar_select %p125, %s126, %s127
      %p131 = pneg %p125
      %p132 = scmp.eq.s32.totalorder %s22, 1
      %p133 = por %p131, %p132
      %p134 = scmp.ne.s32.totalorder %s126, %s129
      %p135 = scmp.eq.s32.totalorder %s22, 0
      %p136 = por %p134, %p135
      %p137 = scmp.ne.s32.totalorder %s126, %s129
      %p138 = scmp.eq.s32.totalorder %s27, 1
      %p139 = por %p137, %p138
      %p140 = scmp.ne.s32.totalorder %s129, %s130
      %p141 = scmp.eq.s32.totalorder %s27, 0
      %p142 = por %p140, %p141
      %p143 = scmp.ne.s32.totalorder %s129, %s130
      %p144 = scmp.eq.s32.totalorder %s28, 1
      %p145 = por %p143, %p144
      %p147 = scmp.ne.s32.totalorder %s130, %s146
      %p148 = scmp.eq.s32.totalorder %s28, 0
      %p149 = por %p147, %p148
      %p150 = scmp.le.s32.totalorder 1, %s22
      %p151 = scmp.lt.s32.totalorder %s22, 3
      %p152 = pnand %p150, %p151
      %p153 = pneg %p152
      // Predicated region
      $region9: #{tpu_custom_call.1} parent=5 // pred_check
        _
      $region10: #{tpu_custom_call.1} parent=5 // pred_check_branch
        %155 = sbr.rel (%p152) target = $region12
      $region11: #{tpu_custom_call.1} parent=5 // pred_region
        %s156 = ssub.s32 %s22, 1
      $region12: #{tpu_custom_call.1} parent=5 // pred_fallthru
        _
      %p157 = scmp.lt.s32.totalorder %s22, 2
      // Predicated region
      $region13: #{tpu_custom_call.1} parent=5 // pred_check
        %p158 = pneg %p157
      $region14: #{tpu_custom_call.1} parent=5 // pred_check_branch
        %160 = sbr.rel (%p158) target = $region16
      $region15: #{tpu_custom_call.1} parent=5 // pred_region
        // Predicated region
        $region17: #{tpu_custom_call.1} parent=15 // pred_check
          %p161 = pneg %p56
        $region18: #{tpu_custom_call.1} parent=15 // pred_check_branch
          %163 = sbr.rel (%p161) target = $region20
        $region19: #{tpu_custom_call.1} parent=15 // pred_region
          %s164 = sand.u32 %s46, 1
          %s165 = scalar_lea.sflag [#allocation3], %s164
          %s166 = sand.u32 %s46, 1
          %s167 = smul.addr %s166, 2
          %s168 = scalar_lea.vmem [#allocation2], %s167
          %170 = vsyncadd %s165, 0
          %s171 = smul.addr %s29, 4
          %s172 = sadd.s32 %s30, %s171
          %s173 = smul.addr %s172, 2
          %s174 = scalar_lea.hbm %s0, %s173
          %s176 = sshll.u32 %s174, 4
          %s177 = int_to_ptr.hbm [resolvable:$true] %s176
          %s178 = sshll.u32 %s168, 4
          %s179 = int_to_ptr.vmem [resolvable:$true] %s178
          %181 = dma.hbm_to_vmem [thread:$0]  %s177, 32, %s179, %s165
        $region20: #{tpu_custom_call.1} parent=15 // pred_fallthru
          _
        // Predicated region
        $region21: #{tpu_custom_call.1} parent=15 // pred_check
          %p182 = pneg %p84
        $region22: #{tpu_custom_call.1} parent=15 // pred_check_branch
          %184 = sbr.rel (%p182) target = $region24
        $region23: #{tpu_custom_call.1} parent=15 // pred_region
          %s185 = sand.u32 %s74, 1
          %s186 = scalar_lea.sflag [#allocation6], %s185
          %s187 = sand.u32 %s74, 1
          %s188 = smul.addr %s187, 2
          %s189 = scalar_lea.vmem [#allocation5], %s188
          %191 = vsyncadd %s186, 0
          %s192 = sadd.s32 %s30, %s29
          %s193 = smul.addr %s192, 2
          %s194 = scalar_lea.hbm %s1, %s193
          %s196 = sshll.u32 %s194, 4
          %s197 = int_to_ptr.hbm [resolvable:$true] %s196
          %s198 = sshll.u32 %s189, 4
          %s199 = int_to_ptr.vmem [resolvable:$true] %s198
          %201 = dma.hbm_to_vmem [thread:$0]  %s197, 32, %s199, %s186
        $region24: #{tpu_custom_call.1} parent=15 // pred_fallthru
          _
      $region16: #{tpu_custom_call.1} parent=5 // pred_fallthru
        _
      %p202 = scmp.le.s32.totalorder 1, %s22
      %p203 = scmp.lt.s32.totalorder %s22, 3
      %p204 = pnand %p202, %p203
      %p205 = pneg %p204
      // Predicated region
      $region25: #{tpu_custom_call.1} parent=5 // pred_check
        _
      $region26: #{tpu_custom_call.1} parent=5 // pred_check_branch
        %207 = sbr.rel (%p204) target = $region28
      $region27: #{tpu_custom_call.1} parent=5 // pred_region
        %s208 = ssub.s32 %s22, 1
        %s209 = sand.u32 %s49, 1
        %s210 = scalar_lea.sflag [#allocation3], %s209
        %s211 = sand.u32 %s49, 1
        %s212 = smul.addr %s211, 2
        %s213 = scalar_lea.vmem [#allocation2], %s212
        // Predicated region
        $region29: #{tpu_custom_call.1} parent=27 // pred_check
          %p214 = pneg %p62
        $region30: #{tpu_custom_call.1} parent=27 // pred_check_branch
          %216 = sbr.rel (%p214) target = $region32
        $region31: #{tpu_custom_call.1} parent=27 // pred_region
          %218 = dma.done %s210, 32
        $region32: #{tpu_custom_call.1} parent=27 // pred_fallthru
          _
        %s219 = sand.u32 %s77, 1
        %s220 = scalar_lea.sflag [#allocation6], %s219
        %s221 = sand.u32 %s77, 1
        %s222 = smul.addr %s221, 2
        %s223 = scalar_lea.vmem [#allocation5], %s222
        // Predicated region
        $region33: #{tpu_custom_call.1} parent=27 // pred_check
          %p224 = pneg %p90
        $region34: #{tpu_custom_call.1} parent=27 // pred_check_branch
          %226 = sbr.rel (%p224) target = $region36
        $region35: #{tpu_custom_call.1} parent=27 // pred_region
          %228 = dma.done %s220, 32
        $region36: #{tpu_custom_call.1} parent=27 // pred_fallthru
          _
        %s229 = sand.u32 %s49, 1
        %s230 = scalar_lea.sflag [#allocation3], %s229
        %s231 = sand.u32 %s49, 1
        %s232 = smul.addr %s231, 2
        %s233 = scalar_lea.vmem [#allocation2], %s232
        %p234 = pneg %p62
        %p235 = pneg %p59
        %s236 = sand.u32 %s77, 1
        %s237 = scalar_lea.sflag [#allocation6], %s236
        %s238 = sand.u32 %s77, 1
        %s239 = smul.addr %s238, 2
        %s240 = scalar_lea.vmem [#allocation5], %s239
        %p241 = pneg %p90
        %p242 = pneg %p87
        %p243 = pneg %p116
        %p244 = pneg %p113
        %s245 = sand.u32 %s103, 1
        %s246 = scalar_lea.sflag [#allocation4], %s245
        %s247 = sand.u32 %s103, 1
        %s248 = scalar_lea.vmem [#allocation7], %s247
        %p249 = pneg %p142
        %p250 = pneg %p139
        %s251 = sand.u32 %s129, 1
        %s252 = scalar_lea.sflag [#allocation9], %s251
        %s253 = sand.u32 %s129, 1
        %s254 = scalar_lea.vmem [#allocation8], %s253
        %p255 = scmp.eq.s32.totalorder %s32, 0
        // Predicated region
        $region37: #{tpu_custom_call.1} parent=27 // pred_check
          %p256 = pneg %p255
        $region38: #{tpu_custom_call.1} parent=27 // pred_check_branch
          %258 = sbr.rel (%p256) target = $region40
        $region39: #{tpu_custom_call.1} parent=27 // pred_region
          %259 = vst [vmem:[%s248] sm:$0x1] 0.0
          %260 = vst [vmem:[%s254] sm:$0x1] 0.0
        $region40: #{tpu_custom_call.1} parent=27 // pred_fallthru
          _
        %v261 = vld [vmem:[%s213] sm:$0x3]
        %v262 = vld [vmem:[%s223] sm:$0x3]
        %vm263 = vcmp.gt.f32.partialorder %v262, 0.0
        %v264 = vsub.f32 %v261, %v262
        %v265 = vsel %vm263, %v264, 0.0
        %v266 = vld [vmem:[%s248] sm:$0x1]
        %v267 = vmul.f32 %v265, %v265
        %vm268 = vcmask 1041408
        %v269 = vsel %vm268, %v267, 0.0
        %v270 = vrot.slane %v269, 4
        %v271 = vadd.f32 %v269, %v270
        %v272 = vrot.slane %v271, 2
        %v273 = vadd.f32 %v271, %v272
        %v274 = vrot.slane %v273, 1
        %v275 = vadd.f32 %v273, %v274
        %v276 = vadd.f32 %v266, %v275
        %277 = vst [vmem:[%s248] sm:$0x1] %v276
        %v278 = vld [vmem:[%s254] sm:$0x1]
        %v279 = vsel %vm263, 1, 0
        %v280 = vcvt.s32.f32 %v279
        %v281 = vsel %vm268, %v280, 0.0
        %v282 = vrot.slane %v281, 4
        %v283 = vadd.f32 %v281, %v282
        %v284 = vrot.slane %v283, 2
        %v285 = vadd.f32 %v283, %v284
        %v286 = vrot.slane %v285, 1
        %v287 = vadd.f32 %v285, %v286
        %v288 = vadd.f32 %v278, %v287
        %289 = vst [vmem:[%s254] sm:$0x1] %v288
        %s290 = sand.u32 %s103, 1
        %s291 = scalar_lea.sflag [#allocation4], %s290
        %s292 = sand.u32 %s103, 1
        %s293 = scalar_lea.vmem [#allocation7], %s292
        %s294 = sand.u32 %s129, 1
        %s295 = scalar_lea.sflag [#allocation9], %s294
        %s296 = sand.u32 %s129, 1
        %s297 = scalar_lea.vmem [#allocation8], %s296
        // Predicated region
        $region41: #{tpu_custom_call.1} parent=27 // pred_check
          %p298 = pneg %p113
        $region42: #{tpu_custom_call.1} parent=27 // pred_check_branch
          %300 = sbr.rel (%p298) target = $region44
        $region43: #{tpu_custom_call.1} parent=27 // pred_region
          %302 = vsyncadd %s291, 0
          %s303 = scalar_lea.hbm %s2, %s31
          %s305 = sshll.u32 %s293, 4
          %s306 = int_to_ptr.vmem [resolvable:$true] %s305
          %s307 = sshll.u32 %s303, 4
          %s308 = int_to_ptr.hbm [resolvable:$true] %s307
          %310 = dma.vmem_to_hbm [thread:$0]  %s306, 16, %s308, %s291
        $region44: #{tpu_custom_call.1} parent=27 // pred_fallthru
          _
        // Predicated region
        $region45: #{tpu_custom_call.1} parent=27 // pred_check
          %p311 = pneg %p139
        $region46: #{tpu_custom_call.1} parent=27 // pred_check_branch
          %313 = sbr.rel (%p311) target = $region48
        $region47: #{tpu_custom_call.1} parent=27 // pred_region
          %315 = vsyncadd %s295, 0
          %s316 = scalar_lea.hbm %s3, %s31
          %s318 = sshll.u32 %s297, 4
          %s319 = int_to_ptr.vmem [resolvable:$true] %s318
          %s320 = sshll.u32 %s316, 4
          %s321 = int_to_ptr.hbm [resolvable:$true] %s320
          %323 = dma.vmem_to_hbm [thread:$0]  %s319, 16, %s321, %s295
        $region48: #{tpu_custom_call.1} parent=27 // pred_fallthru
          _
      $region28: #{tpu_custom_call.1} parent=5 // pred_fallthru
        _
      %p324 = scmp.le.s32.totalorder 2, %s22
      // Predicated region
      $region49: #{tpu_custom_call.1} parent=5 // pred_check
        %p325 = pneg %p324
      $region50: #{tpu_custom_call.1} parent=5 // pred_check_branch
        %327 = sbr.rel (%p325) target = $region52
      $region51: #{tpu_custom_call.1} parent=5 // pred_region
        %s328 = ssub.s32 %s22, 2
        // Predicated region
        $region53: #{tpu_custom_call.1} parent=51 // pred_check
          %p329 = pneg %p119
        $region54: #{tpu_custom_call.1} parent=51 // pred_check_branch
          %331 = sbr.rel (%p329) target = $region56
        $region55: #{tpu_custom_call.1} parent=51 // pred_region
          %s332 = sand.u32 %s104, 1
          %s333 = scalar_lea.sflag [#allocation4], %s332
          %s334 = sand.u32 %s104, 1
          %s335 = scalar_lea.vmem [#allocation7], %s334
          %337 = dma.done %s333, 16
        $region56: #{tpu_custom_call.1} parent=51 // pred_fallthru
          _
        // Predicated region
        $region57: #{tpu_custom_call.1} parent=51 // pred_check
          %p338 = pneg %p145
        $region58: #{tpu_custom_call.1} parent=51 // pred_check_branch
          %340 = sbr.rel (%p338) target = $region60
        $region59: #{tpu_custom_call.1} parent=51 // pred_region
          %s341 = sand.u32 %s130, 1
          %s342 = scalar_lea.sflag [#allocation9], %s341
          %s343 = sand.u32 %s130, 1
          %s344 = scalar_lea.vmem [#allocation8], %s343
          %346 = dma.done %s342, 16
        $region60: #{tpu_custom_call.1} parent=51 // pred_fallthru
          _
      $region52: #{tpu_custom_call.1} parent=5 // pred_fallthru
        _
    $region6: #{tpu_custom_call.1} parent=1 // loop_footer
      %s26 = sadd.s32 1, %s22
    $region7: #{tpu_custom_call.1} parent=1 // loop_footer_branch
      %21 = sbr.rel target = $region3
    $region8: #{tpu_custom_call.1} parent=1 // loop_exit
      _
    %347 = vsyncpa [#allocation3], 1
    %s348 = scalar_lea.sflag [#allocation3], 1
    %349 = vsyncpa %s348, 1
    %350 = vsyncpa [#allocation6], 1
    %s351 = scalar_lea.sflag [#allocation6], 1
    %352 = vsyncpa %s351, 1
    %353 = vsyncpa [#allocation4], 1
    %s354 = scalar_lea.sflag [#allocation4], 1
    %355 = vsyncpa %s354, 1
    %356 = vsyncpa [#allocation9], 1
    %s357 = scalar_lea.sflag [#allocation9], 1
    %358 = vsyncpa %s357, 1

</llo_original>
